<compile_context>
chip_gen: v6e
topology: v6e:2x2x1
jax: 0.10.0
libtpu: 0.0.40
codegen_flags: <defaults>
</compile_context>

<pallas_src>
import functools

import jax
import jax.numpy as jnp
from jax.experimental import pallas as pl
from jax.experimental.pallas import tpu as pltpu

LANES = 128            # vreg lane width
MAX_BLOCK_ROWS = 1024  # (1024, 128) f32 block = 512 KiB per input per buffer
NCORES = 2             # leading 'parallel' grid axis (megacore split on v7x)


def _round_up(x, m):
    return -(-x // m) * m


def _slab_params(x):
    """Choose slab geometry: (n_elems, padded_rows, block_rows)."""
    n = 1
    for d in x.shape:
        n *= int(d)
    n = max(n, 1)
    rows = _round_up(max(pl.cdiv(n, LANES), 1), 8)
    tr = min(MAX_BLOCK_ROWS, rows)
    rows = _round_up(rows, tr)          # block rows evenly divide slab rows
    return n, rows, tr


def _to_slab(x, rows):
    """Flatten to a lane-dense (rows, 128) slab in native dtype (pad copy only if needed)."""
    flat = jnp.ravel(x)
    padded = rows * LANES
    if padded != flat.shape[0]:
        flat = jnp.pad(flat, (0, padded - flat.shape[0]))
    return flat.reshape(rows, LANES)


def _generator_loss_kernel(
    a_ref, ca_ref, b_ref, cb_ref, p_ref, out_ref,
    acc_a_ref, acc_b_ref, acc_p_ref,
    *, n_a, n_b, n_p, scale_a, scale_b, scale_p, mask_a, mask_b, mask_p,
):
    step = pl.program_id(1)
    nsteps = pl.num_programs(1)
    g = pl.program_id(0) * nsteps + step      # global block step handled by this core

    @pl.when(step == 0)
    def _init():
        acc_a_ref[...] = jnp.zeros_like(acc_a_ref)
        acc_b_ref[...] = jnp.zeros_like(acc_b_ref)
        acc_p_ref[...] = jnp.zeros_like(acc_p_ref)

    def _masked(val, n_valid, need_mask):
        # Zero elements whose global flat index >= n_valid (padding / clamped blocks).
        if not need_mask:               # trace-time specialization: skip the select
            return val
        tr = val.shape[0]
        base = (
            jax.lax.broadcasted_iota(jnp.int32, val.shape, 0) * LANES
            + jax.lax.broadcasted_iota(jnp.int32, val.shape, 1)
        )
        return jnp.where(base < (n_valid - g * (tr * LANES)), val, 0.0)

    # Cycle-consistency L1 terms (per-lane f32 accumulation; cast in-kernel).
    da = jnp.abs(a_ref[...].astype(jnp.float32) - ca_ref[...].astype(jnp.float32))
    acc_a_ref[...] += _masked(da, n_a, mask_a)

    db = jnp.abs(b_ref[...].astype(jnp.float32) - cb_ref[...].astype(jnp.float32))
    acc_b_ref[...] += _masked(db, n_b, mask_b)

    # LSGAN term: (p - 1)^2
    dp = p_ref[...].astype(jnp.float32) - 1.0
    acc_p_ref[...] += _masked(dp * dp, n_p, mask_p)

    @pl.when(step == nsteps - 1)
    def _finalize():
        total = (
            scale_a * jnp.sum(acc_a_ref[...])
            + scale_b * jnp.sum(acc_b_ref[...])
            + scale_p * jnp.sum(acc_p_ref[...])
        )
        out_ref[...] = jnp.full((1, 1, 1), total, dtype=jnp.float32)


def generator_loss(
    prob_fake_x_is_real, input_a, input_b, cycle_input_a, cycle_input_b,
    lr_a=0.01, lr_b=0.01,
):
    n_a, rows_a, tr_a = _slab_params(input_a)
    n_b, rows_b, tr_b = _slab_params(input_b)
    n_p, rows_p, tr_p = _slab_params(prob_fake_x_is_real)
    n_ca, _, _ = _slab_params(cycle_input_a)
    n_cb, _, _ = _slab_params(cycle_input_b)
    assert n_a == n_ca and n_b == n_cb, "real/cycled images must have matching sizes"

    a_slab = _to_slab(input_a, rows_a)
    ca_slab = _to_slab(cycle_input_a, rows_a)
    b_slab = _to_slab(input_b, rows_b)
    cb_slab = _to_slab(cycle_input_b, rows_b)
    p_slab = _to_slab(prob_fake_x_is_real, rows_p)

    nb_a = rows_a // tr_a
    nb_b = rows_b // tr_b
    nb_p = rows_p // tr_p
    max_nb = max(nb_a, nb_b, nb_p)
    ncores = NCORES if max_nb >= NCORES else 1   # skip the dead core for tiny inputs
    nb_half = pl.cdiv(max_nb, ncores)
    nb_total = ncores * nb_half

    def make_spec(tr, nb):
        def imap(c, i):
            # Clamp: once this input's blocks are exhausted, re-present the last block
            # (same block index -> no re-DMA); the in-kernel mask zeroes its contribution.
            return (jnp.minimum(c * nb_half + i, nb - 1), 0)
        return pl.BlockSpec((tr, LANES), imap)

    kernel = functools.partial(
        _generator_loss_kernel,
        n_a=int(n_a), n_b=int(n_b), n_p=int(n_p),
        scale_a=float(lr_a) / n_a,
        scale_b=float(lr_b) / n_b,
        scale_p=0.5 / n_p,
        # Mask only when there is a padded tail or the block index is clamped.
        mask_a=(n_a != rows_a * LANES) or (nb_a != nb_total),
        mask_b=(n_b != rows_b * LANES) or (nb_b != nb_total),
        mask_p=(n_p != rows_p * LANES) or (nb_p != nb_total),
    )

    partials = pl.pallas_call(
        kernel,
        out_shape=jax.ShapeDtypeStruct((ncores, 1, 1), jnp.float32),
        grid_spec=pltpu.PrefetchScalarGridSpec(
            num_scalar_prefetch=0,
            grid=(ncores, nb_half),
            in_specs=[
                make_spec(tr_a, nb_a),
                make_spec(tr_a, nb_a),
                make_spec(tr_b, nb_b),
                make_spec(tr_b, nb_b),
                make_spec(tr_p, nb_p),
            ],
            out_specs=pl.BlockSpec((1, 1, 1), lambda c, i: (c, 0, 0)),
            scratch_shapes=[
                pltpu.VMEM((tr_a, LANES), jnp.float32),
                pltpu.VMEM((tr_b, LANES), jnp.float32),
                pltpu.VMEM((tr_p, LANES), jnp.float32),
            ],
        ),
        compiler_params=pltpu.CompilerParams(
            dimension_semantics=("parallel", "arbitrary"),
        ),
    )(a_slab, ca_slab, b_slab, cb_slab, p_slab)

    # Combine the per-core partial losses (<= 2 scalars) outside the kernel.
    return jnp.sum(partials)


def _reference(prob, a, b, ca, cb, lr_a=0.01, lr_b=0.01):
    cl_a = lr_a * jnp.mean(jnp.abs(a - ca))
    cl_b = lr_b * jnp.mean(jnp.abs(b - cb))
    lsgan = jnp.mean((prob - 1.0) ** 2) * 0.5
    return cl_a + cl_b + lsgan


if __name__ == "__main__":
    key = jax.random.PRNGKey(0)
    k1, k2, k3, k4, k5 = jax.random.split(key, 5)

    # NCHW shapes consistent with the PyTorch module's forward.
    input_a = jax.random.normal(k1, (2, 4, 16, 16), dtype=jnp.float32)
    input_b = jax.random.normal(k2, (2, 4, 16, 16), dtype=jnp.float32)
    cycle_input_a = jax.random.normal(k3, (2, 4, 16, 16), dtype=jnp.float32)
    cycle_input_b = jax.random.normal(k4, (2, 4, 16, 16), dtype=jnp.float32)
    prob_fake_x_is_real = jax.random.uniform(k5, (2, 1, 16, 16), dtype=jnp.float32)

    loss = generator_loss(
        prob_fake_x_is_real, input_a, input_b, cycle_input_a, cycle_input_b,
        lr_a=0.01, lr_b=0.01,
    )
    loss = jax.block_until_ready(loss)

    ref = _reference(
        prob_fake_x_is_real, input_a, input_b, cycle_input_a, cycle_input_b,
        lr_a=0.01, lr_b=0.01,
    )
    assert jnp.allclose(loss, ref, rtol=1e-5, atol=1e-6), (loss, ref)
    print("KERNEL_OK")
</pallas_src>

<mosaic_0001>
module attributes {stable_mosaic.version = 11 : i64} {
  func.func @_generator_loss_kernel(%arg0: i32, %arg1: i32, %arg2: memref<16x128xf32, #tpu.memory_space<vmem>>, %arg3: memref<16x128xf32, #tpu.memory_space<vmem>>, %arg4: memref<16x128xf32, #tpu.memory_space<vmem>>, %arg5: memref<16x128xf32, #tpu.memory_space<vmem>>, %arg6: memref<8x128xf32, #tpu.memory_space<vmem>>, %arg7: memref<1x1x1xf32, #tpu.memory_space<vmem>>, %arg8: memref<16x128xf32, #tpu.memory_space<vmem>>, %arg9: memref<16x128xf32, #tpu.memory_space<vmem>>, %arg10: memref<8x128xf32, #tpu.memory_space<vmem>>) attributes {dimension_semantics = [#tpu.dimension_semantics<parallel>, #tpu.dimension_semantics<arbitrary>], iteration_bounds = array<i64: 1, 1>, scalar_prefetch = 0 : i64, scratch_operands = 3 : i64, tpu.core_type = #tpu.core_type<tc>, window_params = [{transform_indices = @transform_0, window_bounds = array<i64: 16, 128>}, {transform_indices = @transform_1, window_bounds = array<i64: 16, 128>}, {transform_indices = @transform_2, window_bounds = array<i64: 16, 128>}, {transform_indices = @transform_3, window_bounds = array<i64: 16, 128>}, {transform_indices = @transform_4, window_bounds = array<i64: 8, 128>}, {transform_indices = @transform_5, window_bounds = array<i64: 1, 1, 1>}]} {
    %c1_i32 = arith.constant 1 : i32
    %0 = arith.muli %arg0, %c1_i32 : i32
    %1 = arith.addi %0, %arg1 : i32
    %c0_i32 = arith.constant 0 : i32
    %2 = arith.cmpi eq, %arg1, %c0_i32 : i32
    %3 = arith.extui %2 : i1 to i32
    %c0_i32_0 = arith.constant 0 : i32
    %4 = arith.cmpi ne, %3, %c0_i32_0 : i32
    scf.if %4 {
      %cst_25 = arith.constant 0.000000e+00 : f32
      %40 = vector.broadcast %cst_25 : f32 to vector<16x128xf32>
      %c0_26 = arith.constant 0 : index
      %c0_27 = arith.constant 0 : index
      %41 = vector.load %arg8[%c0_26, %c0_27] : memref<16x128xf32, #tpu.memory_space<vmem>>, vector<16x128xf32>
      tpu.vector_store %arg8[%c0_26, %c0_27], %40 {strides = array<i32>} : memref<16x128xf32, #tpu.memory_space<vmem>>, vector<16x128xf32>,
      %cst_28 = arith.constant 0.000000e+00 : f32
      %42 = vector.broadcast %cst_28 : f32 to vector<16x128xf32>
      %c0_29 = arith.constant 0 : index
      %c0_30 = arith.constant 0 : index
      %43 = vector.load %arg9[%c0_29, %c0_30] : memref<16x128xf32, #tpu.memory_space<vmem>>, vector<16x128xf32>
      tpu.vector_store %arg9[%c0_29, %c0_30], %42 {strides = array<i32>} : memref<16x128xf32, #tpu.memory_space<vmem>>, vector<16x128xf32>,
      %cst_31 = arith.constant 0.000000e+00 : f32
      %44 = vector.broadcast %cst_31 : f32 to vector<8x128xf32>
      %c0_32 = arith.constant 0 : index
      %c0_33 = arith.constant 0 : index
      %45 = vector.load %arg10[%c0_32, %c0_33] : memref<8x128xf32, #tpu.memory_space<vmem>>, vector<8x128xf32>
      tpu.vector_store %arg10[%c0_32, %c0_33], %44 {strides = array<i32>} : memref<8x128xf32, #tpu.memory_space<vmem>>, vector<8x128xf32>,
    } else {
    }
    %c0 = arith.constant 0 : index
    %c0_1 = arith.constant 0 : index
    %5 = vector.load %arg2[%c0, %c0_1] : memref<16x128xf32, #tpu.memory_space<vmem>>, vector<16x128xf32>
    %c0_2 = arith.constant 0 : index
    %c0_3 = arith.constant 0 : index
    %6 = vector.load %arg3[%c0_2, %c0_3] : memref<16x128xf32, #tpu.memory_space<vmem>>, vector<16x128xf32>
    %7 = arith.subf %5, %6 : vector<16x128xf32>
    %8 = math.absf %7 : vector<16x128xf32>
    %c0_4 = arith.constant 0 : index
    %c0_5 = arith.constant 0 : index
    %9 = vector.load %arg8[%c0_4, %c0_5] : memref<16x128xf32, #tpu.memory_space<vmem>>, vector<16x128xf32>
    %10 = arith.addf %9, %8 : vector<16x128xf32>
    %c0_6 = arith.constant 0 : index
    %c0_7 = arith.constant 0 : index
    %11 = vector.load %arg8[%c0_6, %c0_7] : memref<16x128xf32, #tpu.memory_space<vmem>>, vector<16x128xf32>
    tpu.vector_store %arg8[%c0_6, %c0_7], %10 {strides = array<i32>} : memref<16x128xf32, #tpu.memory_space<vmem>>, vector<16x128xf32>,
    %c0_8 = arith.constant 0 : index
    %c0_9 = arith.constant 0 : index
    %12 = vector.load %arg4[%c0_8, %c0_9] : memref<16x128xf32, #tpu.memory_space<vmem>>, vector<16x128xf32>
    %c0_10 = arith.constant 0 : index
    %c0_11 = arith.constant 0 : index
    %13 = vector.load %arg5[%c0_10, %c0_11] : memref<16x128xf32, #tpu.memory_space<vmem>>, vector<16x128xf32>
    %14 = arith.subf %12, %13 : vector<16x128xf32>
    %15 = math.absf %14 : vector<16x128xf32>
    %c0_12 = arith.constant 0 : index
    %c0_13 = arith.constant 0 : index
    %16 = vector.load %arg9[%c0_12, %c0_13] : memref<16x128xf32, #tpu.memory_space<vmem>>, vector<16x128xf32>
    %17 = arith.addf %16, %15 : vector<16x128xf32>
    %c0_14 = arith.constant 0 : index
    %c0_15 = arith.constant 0 : index
    %18 = vector.load %arg9[%c0_14, %c0_15] : memref<16x128xf32, #tpu.memory_space<vmem>>, vector<16x128xf32>
    tpu.vector_store %arg9[%c0_14, %c0_15], %17 {strides = array<i32>} : memref<16x128xf32, #tpu.memory_space<vmem>>, vector<16x128xf32>,
    %c0_16 = arith.constant 0 : index
    %c0_17 = arith.constant 0 : index
    %19 = vector.load %arg6[%c0_16, %c0_17] : memref<8x128xf32, #tpu.memory_space<vmem>>, vector<8x128xf32>
    %cst = arith.constant 1.000000e+00 : f32
    %20 = vector.broadcast %cst : f32 to vector<8x128xf32>
    %21 = arith.subf %19, %20 : vector<8x128xf32>
    %c0_18 = arith.constant 0 : index
    %c0_19 = arith.constant 0 : index
    %22 = vector.load %arg10[%c0_18, %c0_19] : memref<8x128xf32, #tpu.memory_space<vmem>>, vector<8x128xf32>
    %23 = arith.mulf %21, %21 : vector<8x128xf32>
    %24 = tpu.iota {dimensions = array<i32: 0>} : vector<8x128xi32>
    %c128_i32 = arith.constant 128 : i32
    %25 = vector.broadcast %c128_i32 : i32 to vector<8x128xi32>
    %26 = arith.muli %24, %25 : vector<8x128xi32>
    %27 = tpu.iota {dimensions = array<i32: 1>} : vector<8x128xi32>
    %28 = arith.addi %26, %27 : vector<8x128xi32>
    %c1024_i32 = arith.constant 1024 : i32
    %29 = arith.muli %1, %c1024_i32 : i32
    %c512_i32 = arith.constant 512 : i32
    %30 = arith.subi %c512_i32, %29 : i32
    %31 = vector.broadcast %30 : i32 to vector<8x128xi32>
    %32 = arith.cmpi slt, %28, %31 : vector<8x128xi32>
    %cst_20 = arith.constant 0.000000e+00 : f32
    %33 = vector.broadcast %cst_20 : f32 to vector<8x128xf32>
    %34 = arith.select %32, %23, %33 : vector<8x128xi1>, vector<8x128xf32>
    %35 = arith.addf %22, %34 : vector<8x128xf32>
    %c0_21 = arith.constant 0 : index
    %c0_22 = arith.constant 0 : index
    %36 = vector.load %arg10[%c0_21, %c0_22] : memref<8x128xf32, #tpu.memory_space<vmem>>, vector<8x128xf32>
    tpu.vector_store %arg10[%c0_21, %c0_22], %35 {strides = array<i32>} : memref<8x128xf32, #tpu.memory_space<vmem>>, vector<8x128xf32>,
    %c0_i32_23 = arith.constant 0 : i32
    %37 = arith.cmpi eq, %arg1, %c0_i32_23 : i32
    %38 = arith.extui %37 : i1 to i32
    %c0_i32_24 = arith.constant 0 : i32
    %39 = arith.cmpi ne, %38, %c0_i32_24 : i32
    scf.if %39 {
      %c0_25 = arith.constant 0 : index
      %c0_26 = arith.constant 0 : index
      %40 = vector.load %arg8[%c0_25, %c0_26] : memref<16x128xf32, #tpu.memory_space<vmem>>, vector<16x128xf32>
      %41 = vector.shape_cast %40 : vector<16x128xf32> to vector<1x16x128xf32>
      %cst_27 = arith.constant dense<0.000000e+00> : vector<1xf32>
      %42 = vector.multi_reduction <add>, %41, %cst_27 [1, 2] : vector<1x16x128xf32> to vector<1xf32>
      %43 = vector.shape_cast %42 : vector<1xf32> to vector<1x1x1xf32>
      %44 = vector.extract %43[0, 0, 0] : f32 from vector<1x1x1xf32>
      %cst_28 = arith.constant 4.88281239E-6 : f32
      %45 = arith.mulf %cst_28, %44 : f32
      %c0_29 = arith.constant 0 : index
      %c0_30 = arith.constant 0 : index
      %46 = vector.load %arg9[%c0_29, %c0_30] : memref<16x128xf32, #tpu.memory_space<vmem>>, vector<16x128xf32>
      %47 = vector.shape_cast %46 : vector<16x128xf32> to vector<1x16x128xf32>
      %cst_31 = arith.constant dense<0.000000e+00> : vector<1xf32>
      %48 = vector.multi_reduction <add>, %47, %cst_31 [1, 2] : vector<1x16x128xf32> to vector<1xf32>
      %49 = vector.shape_cast %48 : vector<1xf32> to vector<1x1x1xf32>
      %50 = vector.extract %49[0, 0, 0] : f32 from vector<1x1x1xf32>
      %cst_32 = arith.constant 4.88281239E-6 : f32
      %51 = arith.mulf %cst_32, %50 : f32
      %52 = arith.addf %45, %51 : f32
      %c0_33 = arith.constant 0 : index
      %c0_34 = arith.constant 0 : index
      %53 = vector.load %arg10[%c0_33, %c0_34] : memref<8x128xf32, #tpu.memory_space<vmem>>, vector<8x128xf32>
      %54 = vector.shape_cast %53 : vector<8x128xf32> to vector<1x8x128xf32>
      %cst_35 = arith.constant dense<0.000000e+00> : vector<1xf32>
      %55 = vector.multi_reduction <add>, %54, %cst_35 [1, 2] : vector<1x8x128xf32> to vector<1xf32>
      %56 = vector.shape_cast %55 : vector<1xf32> to vector<1x1x1xf32>
      %57 = vector.extract %56[0, 0, 0] : f32 from vector<1x1x1xf32>
      %cst_36 = arith.constant 9.765625E-4 : f32
      %58 = arith.mulf %cst_36, %57 : f32
      %59 = arith.addf %52, %58 : f32
      %60 = vector.broadcast %59 : f32 to vector<1x1x1xf32>
      %c0_37 = arith.constant 0 : index
      %c0_38 = arith.constant 0 : index
      %c0_39 = arith.constant 0 : index
      %61 = vector.load %arg7[%c0_37, %c0_38, %c0_39] : memref<1x1x1xf32, #tpu.memory_space<vmem>>, vector<1x1x1xf32>
      tpu.vector_store %arg7[%c0_37, %c0_38, %c0_39], %60 {strides = array<i32>} : memref<1x1x1xf32, #tpu.memory_space<vmem>>, vector<1x1x1xf32>,
    } else {
    }
    return
  }
  func.func @transform_0(%arg0: i32, %arg1: i32) -> (i32, i32) {
    %c1_i32 = arith.constant 1 : i32
    %0 = arith.muli %arg0, %c1_i32 : i32
    %1 = arith.addi %0, %arg1 : i32
    %c0_i32 = arith.constant 0 : i32
    %2 = arith.minsi %1, %c0_i32 : i32
    %c0_i32_0 = arith.constant 0 : i32
    %c0_i32_1 = arith.constant 0 : i32
    return %2, %c0_i32_0 : i32, i32
  }
  func.func @transform_1(%arg0: i32, %arg1: i32) -> (i32, i32) {
    %c1_i32 = arith.constant 1 : i32
    %0 = arith.muli %arg0, %c1_i32 : i32
    %1 = arith.addi %0, %arg1 : i32
    %c0_i32 = arith.constant 0 : i32
    %2 = arith.minsi %1, %c0_i32 : i32
    %c0_i32_0 = arith.constant 0 : i32
    %c0_i32_1 = arith.constant 0 : i32
    return %2, %c0_i32_0 : i32, i32
  }
  func.func @transform_2(%arg0: i32, %arg1: i32) -> (i32, i32) {
    %c1_i32 = arith.constant 1 : i32
    %0 = arith.muli %arg0, %c1_i32 : i32
    %1 = arith.addi %0, %arg1 : i32
    %c0_i32 = arith.constant 0 : i32
    %2 = arith.minsi %1, %c0_i32 : i32
    %c0_i32_0 = arith.constant 0 : i32
    %c0_i32_1 = arith.constant 0 : i32
    return %2, %c0_i32_0 : i32, i32
  }
  func.func @transform_3(%arg0: i32, %arg1: i32) -> (i32, i32) {
    %c1_i32 = arith.constant 1 : i32
    %0 = arith.muli %arg0, %c1_i32 : i32
    %1 = arith.addi %0, %arg1 : i32
    %c0_i32 = arith.constant 0 : i32
    %2 = arith.minsi %1, %c0_i32 : i32
    %c0_i32_0 = arith.constant 0 : i32
    %c0_i32_1 = arith.constant 0 : i32
    return %2, %c0_i32_0 : i32, i32
  }
  func.func @transform_4(%arg0: i32, %arg1: i32) -> (i32, i32) {
    %c1_i32 = arith.constant 1 : i32
    %0 = arith.muli %arg0, %c1_i32 : i32
    %1 = arith.addi %0, %arg1 : i32
    %c0_i32 = arith.constant 0 : i32
    %2 = arith.minsi %1, %c0_i32 : i32
    %c0_i32_0 = arith.constant 0 : i32
    %c0_i32_1 = arith.constant 0 : i32
    return %2, %c0_i32_0 : i32, i32
  }
  func.func @transform_5(%arg0: i32, %arg1: i32) -> (i32, i32, i32) {
    %c0_i32 = arith.constant 0 : i32
    %c0_i32_0 = arith.constant 0 : i32
    %c0_i32_1 = arith.constant 0 : i32
    return %arg0, %c0_i32, %c0_i32_0 : i32, i32, i32
  }
}

</mosaic_0001>

<llo_original>
// kernel: tpu_custom_call.1
$region0: #{tpu_custom_call.1}
  #allocation0 [shape = 'u32[]', space=smem, size = 0x4, offset = 0x4, fixed_abs, tag = 'smem constant byte address 0x4 - core index']
  #allocation1 [shape = 'u32[144,128]{1,0:T(1,128)}', space=vmem, size = 0x12000, scoped, tag = 'internal scratch']
  #allocation2 [shape = 'f32[16,128]{1,0:T(8,128)}', space=vmem, size = 0x2000, scoped, tag = 'scratch operand']
  #allocation3 [shape = 'f32[16,128]{1,0:T(8,128)}', space=vmem, size = 0x2000, scoped, tag = 'scratch operand']
  #allocation4 [shape = 'f32[8,128]{1,0:T(8,128)}', space=vmem, size = 0x1000, scoped, tag = 'scratch operand']
  %s0 = inlined_call_operand.hbm [shape: f32[16,128], index: 0, kind: input, shape index: {}]
  %s1 = inlined_call_operand.hbm [shape: f32[16,128], index: 1, kind: input, shape index: {}]
  %s2 = inlined_call_operand.hbm [shape: f32[16,128], index: 2, kind: input, shape index: {}]
  %s3 = inlined_call_operand.hbm [shape: f32[16,128], index: 3, kind: input, shape index: {}]
  %s4 = inlined_call_operand.hbm [shape: f32[8,128], index: 4, kind: input, shape index: {}]
  %s5 = inlined_call_operand.hbm [shape: f32[1,1,1], index: 5, kind: output, shape index: {}]
  %s6 = sld [smem:[#allocation0]]
  $region58: #{tpu_custom_call.1} parent=0
    _
  %s8 = ssub.s32 1, %s6
  %s9 = scalar_select 0, %s8, %s6
  $region1: #{tpu_custom_call.1} parent=0
    #allocation5 [shape = 'u8[8192]{0}', space=vmem, size = 0x2000, scoped, tag = 'input window, operand 0, single buffered']
    #allocation6 [shape = 's32[1]{0}', space=sflag, size = 0x4, scoped, tag = 'scoped memory for tpu_custom_call.1']
    #allocation7 [shape = 's32[1]{0}', space=sflag, size = 0x4, scoped, tag = 'scoped memory for tpu_custom_call.1']
    #allocation8 [shape = 'u8[8192]{0}', space=vmem, size = 0x2000, scoped, tag = 'input window, operand 1, single buffered']
    #allocation9 [shape = 's32[1]{0}', space=sflag, size = 0x4, scoped, tag = 'scoped memory for tpu_custom_call.1']
    #allocation10 [shape = 'u8[8192]{0}', space=vmem, size = 0x2000, scoped, tag = 'input window, operand 2, single buffered']
    #allocation11 [shape = 'u8[8192]{0}', space=vmem, size = 0x2000, scoped, tag = 'input window, operand 3, single buffered']
    #allocation12 [shape = 's32[1]{0}', space=sflag, size = 0x4, scoped, tag = 'scoped memory for tpu_custom_call.1']
    #allocation13 [shape = 'u8[4096]{0}', space=vmem, size = 0x1000, scoped, tag = 'input window, operand 4, single buffered']
    #allocation14 [shape = 'u8[512]{0}', space=vmem, size = 0x400, scoped, tag = 'output window, operand 0, single buffered']
    %10 = vsyncpa [#allocation6], 0
    %11 = vsyncpa [#allocation9], 0
    %12 = vsyncpa [#allocation12], 0
    %13 = vsyncpa [#allocation7], 0
    // Predicated region
    $region2: #{tpu_custom_call.1} parent=1 // pred_check
      _
    $region3: #{tpu_custom_call.1} parent=1 // pred_check_branch
      %15 = sbr.rel (0) target = $region5
    $region4: #{tpu_custom_call.1} parent=1 // pred_region
      %s16 = sadd.s32 0, 0
      %p17 = scmp.lt.s32.totalorder %s16, 0
      %s18 = scalar_select %p17, %s16, 0
      %s19 = smul.u32 2, %s18
      %s21 = ssub.s32 256, 256
      %22 = vsyncadd [#allocation6], %s21
      %s23 = smul.addr %s19, 128
      %s24 = scalar_lea.hbm %s0, %s23
      %s25 = sshll.u32 [#allocation5], 4
      %s26 = int_to_ptr.vmem [resolvable:$true] %s25
      %31 = dma.hbm_to_vmem [thread:$0]  %s24, 256, %s26, [#allocation6], 128, 128, 8
    $region5: #{tpu_custom_call.1} parent=1 // pred_fallthru
      _
    // Predicated region
    $region6: #{tpu_custom_call.1} parent=1 // pred_check
      _
    $region7: #{tpu_custom_call.1} parent=1 // pred_check_branch
      %33 = sbr.rel (0) target = $region9
    $region8: #{tpu_custom_call.1} parent=1 // pred_region
      %s34 = sadd.s32 0, 0
      %p35 = scmp.lt.s32.totalorder %s34, 0
      %s36 = scalar_select %p35, %s34, 0
      %s37 = smul.u32 2, %s36
      %s39 = ssub.s32 256, 256
      %40 = vsyncadd [#allocation9], %s39
      %s41 = smul.addr %s37, 128
      %s42 = scalar_lea.hbm %s1, %s41
      %s43 = sshll.u32 [#allocation8], 4
      %s44 = int_to_ptr.vmem [resolvable:$true] %s43
      %49 = dma.hbm_to_vmem [thread:$0]  %s42, 256, %s44, [#allocation9], 128, 128, 8
    $region9: #{tpu_custom_call.1} parent=1 // pred_fallthru
      _
    // Predicated region
    $region10: #{tpu_custom_call.1} parent=1 // pred_check
      _
    $region11: #{tpu_custom_call.1} parent=1 // pred_check_branch
      %51 = sbr.rel (0) target = $region13
    $region12: #{tpu_custom_call.1} parent=1 // pred_region
      %s52 = sadd.s32 0, 0
      %p53 = scmp.lt.s32.totalorder %s52, 0
      %s54 = scalar_select %p53, %s52, 0
      %s55 = smul.u32 2, %s54
      %s57 = ssub.s32 256, 256
      %58 = vsyncadd [#allocation9], %s57
      %s59 = smul.addr %s55, 128
      %s60 = scalar_lea.hbm %s2, %s59
      %s61 = sshll.u32 [#allocation10], 4
      %s62 = int_to_ptr.vmem [resolvable:$true] %s61
      %67 = dma.hbm_to_vmem [thread:$0]  %s60, 256, %s62, [#allocation9], 128, 128, 8
    $region13: #{tpu_custom_call.1} parent=1 // pred_fallthru
      _
    // Predicated region
    $region14: #{tpu_custom_call.1} parent=1 // pred_check
      _
    $region15: #{tpu_custom_call.1} parent=1 // pred_check_branch
      %69 = sbr.rel (0) target = $region17
    $region16: #{tpu_custom_call.1} parent=1 // pred_region
      %s70 = sadd.s32 0, 0
      %p71 = scmp.lt.s32.totalorder %s70, 0
      %s72 = scalar_select %p71, %s70, 0
      %s73 = smul.u32 2, %s72
      %s75 = ssub.s32 256, 256
      %76 = vsyncadd [#allocation12], %s75
      %s77 = smul.addr %s73, 128
      %s78 = scalar_lea.hbm %s3, %s77
      %s79 = sshll.u32 [#allocation11], 4
      %s80 = int_to_ptr.vmem [resolvable:$true] %s79
      %85 = dma.hbm_to_vmem [thread:$0]  %s78, 256, %s80, [#allocation12], 128, 128, 8
    $region17: #{tpu_custom_call.1} parent=1 // pred_fallthru
      _
    // Predicated region
    $region18: #{tpu_custom_call.1} parent=1 // pred_check
      _
    $region19: #{tpu_custom_call.1} parent=1 // pred_check_branch
      %87 = sbr.rel (0) target = $region21
    $region20: #{tpu_custom_call.1} parent=1 // pred_region
      %s88 = sadd.s32 0, 0
      %p89 = scmp.lt.s32.totalorder %s88, 0
      %s90 = scalar_select %p89, %s88, 0
      %s92 = ssub.s32 128, 128
      %93 = vsyncadd [#allocation12], %s92
      %s94 = smul.addr %s90, 128
      %s95 = scalar_lea.hbm %s4, %s94
      %s97 = sshll.u32 [#allocation13], 4
      %s98 = int_to_ptr.vmem [resolvable:$true] %s97
      %100 = dma.hbm_to_vmem [thread:$0]  %s95, 128, %s98, [#allocation12]
    $region21: #{tpu_custom_call.1} parent=1 // pred_fallthru
      _
    // Predicated region
    $region22: #{tpu_custom_call.1} parent=1 // pred_check
      _
    $region23: #{tpu_custom_call.1} parent=1 // pred_check_branch
      %102 = sbr.rel (0) target = $region25
    $region24: #{tpu_custom_call.1} parent=1 // pred_region
      %103 = dma.done [#allocation6], 256
    $region25: #{tpu_custom_call.1} parent=1 // pred_fallthru
      _
    // Predicated region
    $region26: #{tpu_custom_call.1} parent=1 // pred_check
      _
    $region27: #{tpu_custom_call.1} parent=1 // pred_check_branch
      %105 = sbr.rel (0) target = $region29
    $region28: #{tpu_custom_call.1} parent=1 // pred_region
      %106 = dma.done [#allocation9], 256
    $region29: #{tpu_custom_call.1} parent=1 // pred_fallthru
      _
    // Predicated region
    $region30: #{tpu_custom_call.1} parent=1 // pred_check
      _
    $region31: #{tpu_custom_call.1} parent=1 // pred_check_branch
      %108 = sbr.rel (0) target = $region33
    $region32: #{tpu_custom_call.1} parent=1 // pred_region
      %109 = dma.done [#allocation9], 256
    $region33: #{tpu_custom_call.1} parent=1 // pred_fallthru
      _
    // Predicated region
    $region34: #{tpu_custom_call.1} parent=1 // pred_check
      _
    $region35: #{tpu_custom_call.1} parent=1 // pred_check_branch
      %111 = sbr.rel (0) target = $region37
    $region36: #{tpu_custom_call.1} parent=1 // pred_region
      %112 = dma.done [#allocation12], 256
    $region37: #{tpu_custom_call.1} parent=1 // pred_fallthru
      _
    // Predicated region
    $region38: #{tpu_custom_call.1} parent=1 // pred_check
      _
    $region39: #{tpu_custom_call.1} parent=1 // pred_check_branch
      %114 = sbr.rel (0) target = $region41
    $region40: #{tpu_custom_call.1} parent=1 // pred_region
      %115 = dma.done [#allocation12], 128
    $region41: #{tpu_custom_call.1} parent=1 // pred_fallthru
      _
    %s116 = sadd.s32 0, 0
    %p117 = scmp.lt.s32.totalorder %s116, 0
    %s118 = scalar_select %p117, %s116, 0
    %s119 = smul.u32 2, %s118
    %s120 = sadd.s32 0, 0
    %p121 = scmp.lt.s32.totalorder %s120, 0
    %s122 = scalar_select %p121, %s120, 0
    %s123 = smul.u32 2, %s122
    %s124 = sadd.s32 0, 0
    %p125 = scmp.lt.s32.totalorder %s124, 0
    %s126 = scalar_select %p125, %s124, 0
    %s127 = smul.u32 2, %s126
    %s128 = sadd.s32 0, 0
    %p129 = scmp.lt.s32.totalorder %s128, 0
    %s130 = scalar_select %p129, %s128, 0
    %s131 = smul.u32 2, %s130
    %s132 = sadd.s32 0, 0
    %p133 = scmp.lt.s32.totalorder %s132, 0
    %s134 = scalar_select %p133, %s132, 0
    %s135 = sadd.s32 0, 0
    %p136 = scmp.eq.s32.totalorder 0, 0
    // Predicated region
    $region42: #{tpu_custom_call.1} parent=1 // pred_check
      %p137 = pneg %p136
    $region43: #{tpu_custom_call.1} parent=1 // pred_check_branch
      %139 = sbr.rel (%p137) target = $region45
    $region44: #{tpu_custom_call.1} parent=1 // pred_region
      %140 = vst [vmem:[#allocation2] sm:$0xff] 0.0
      %141 = vst [vmem:[#allocation2 + $0x8] sm:$0xff] 0.0
      %142 = vst [vmem:[#allocation3] sm:$0xff] 0.0
      %143 = vst [vmem:[#allocation3 + $0x8] sm:$0xff] 0.0
      %144 = vst [vmem:[#allocation4] sm:$0xff] 0.0
    $region45: #{tpu_custom_call.1} parent=1 // pred_fallthru
      _
    %v145 = vld [vmem:[#allocation5] sm:$0xff]
    %v146 = vld [vmem:[#allocation5 + $0x8] sm:$0xff]
    %v147 = vld [vmem:[#allocation8] sm:$0xff]
    %v148 = vld [vmem:[#allocation8 + $0x8] sm:$0xff]
    %v149 = vsub.f32 %v145, %v147
    %v150 = vsub.f32 %v146, %v148
    %v151 = vand.u32 2147483647, %v149
    %v152 = vand.u32 2147483647, %v150
    %v153 = vld [vmem:[#allocation2] sm:$0xff]
    %v154 = vld [vmem:[#allocation2 + $0x8] sm:$0xff]
    %v155 = vadd.f32 %v153, %v151
    %v156 = vadd.f32 %v154, %v152
    %157 = vst [vmem:[#allocation2] sm:$0xff] %v155
    %158 = vst [vmem:[#allocation2 + $0x8] sm:$0xff] %v156
    %v159 = vld [vmem:[#allocation10] sm:$0xff]
    %v160 = vld [vmem:[#allocation10 + $0x8] sm:$0xff]
    %v161 = vld [vmem:[#allocation11] sm:$0xff]
    %v162 = vld [vmem:[#allocation11 + $0x8] sm:$0xff]
    %v163 = vsub.f32 %v159, %v161
    %v164 = vsub.f32 %v160, %v162
    %v165 = vand.u32 2147483647, %v163
    %v166 = vand.u32 2147483647, %v164
    %v167 = vld [vmem:[#allocation3] sm:$0xff]
    %v168 = vld [vmem:[#allocation3 + $0x8] sm:$0xff]
    %v169 = vadd.f32 %v167, %v165
    %v170 = vadd.f32 %v168, %v166
    %171 = vst [vmem:[#allocation3] sm:$0xff] %v169
    %172 = vst [vmem:[#allocation3 + $0x8] sm:$0xff] %v170
    %v173 = vld [vmem:[#allocation13] sm:$0xff]
    %v174 = vsub.f32 %v173, 1.0
    %v175 = vld [vmem:[#allocation4] sm:$0xff]
    %v176 = vmul.f32 %v174, %v174
    %v177 = vlaneseq
    %v178 = vshrl.u32 %v177, 7
    %v179 = vmul.u32 %v178, 128
    %v180 = vlaneseq
    %v181 = vand.u32 %v180, 127
    %v182 = vadd.s32 %v179, %v181
    %s183 = smul.u32 %s135, 1024
    %s184 = ssub.s32 512, %s183
    %v185 = vstv %s184
    %vm186 = vcmp.lt.s32.totalorder %v182, %v185
    %v187 = vsel %vm186, %v176, 0.0
    %v188 = vadd.f32 %v175, %v187
    %189 = vst [vmem:[#allocation4] sm:$0xff] %v188
    // Predicated region
    $region46: #{tpu_custom_call.1} parent=1 // pred_check
      %p190 = pneg %p136
    $region47: #{tpu_custom_call.1} parent=1 // pred_check_branch
      %192 = sbr.rel (%p190) target = $region49
    $region48: #{tpu_custom_call.1} parent=1 // pred_region
      %v193 = vld [vmem:[#allocation2] sm:$0xff]
      %v194 = vld [vmem:[#allocation2 + $0x8] sm:$0xff]
      %v195 = vadd.f32 %v193, %v194
      %196 = vadd.xlane.f32.xlu0 %v195
      %v197 = vpop.xlane.xlu0 %196
      %v198 = vrot.slane %v197, 4
      %v199 = vadd.f32 %v197, %v198
      %v200 = vrot.slane %v199, 2
      %v201 = vadd.f32 %v199, %v200
      %v202 = vrot.slane %v201, 1
      %v203 = vadd.f32 %v201, %v202
      %s204 = vtos %v203
      %s205 = smul.f32 %s204, 4.8828124e-06
      %v206 = vld [vmem:[#allocation3] sm:$0xff]
      %v207 = vld [vmem:[#allocation3 + $0x8] sm:$0xff]
      %v208 = vadd.f32 %v206, %v207
      %209 = vadd.xlane.f32.xlu0 %v208
      %v210 = vpop.xlane.xlu0 %209
      %v211 = vrot.slane %v210, 4
      %v212 = vadd.f32 %v210, %v211
      %v213 = vrot.slane %v212, 2
      %v214 = vadd.f32 %v212, %v213
      %v215 = vrot.slane %v214, 1
      %v216 = vadd.f32 %v214, %v215
      %s217 = vtos %v216
      %s218 = smul.f32 %s217, 4.8828124e-06
      %s219 = sadd.f32 %s205, %s218
      %v220 = vld [vmem:[#allocation4] sm:$0xff]
      %221 = vadd.xlane.f32.xlu0 %v220
      %v222 = vpop.xlane.xlu0 %221
      %v223 = vrot.slane %v222, 4
      %v224 = vadd.f32 %v222, %v223
      %v225 = vrot.slane %v224, 2
      %v226 = vadd.f32 %v224, %v225
      %v227 = vrot.slane %v226, 1
      %v228 = vadd.f32 %v226, %v227
      %s229 = vtos %v228
      %s230 = smul.f32 %s229, 0.0009765625
      %s231 = sadd.f32 %s219, %s230
      %v232 = vstv %s231
      %vm233 = vcmask 0
      %234 = vst.msk [vmem:[#allocation14] sm:$0x1] %vm233, %v232
    $region49: #{tpu_custom_call.1} parent=1 // pred_fallthru
      _
    // Predicated region
    $region50: #{tpu_custom_call.1} parent=1 // pred_check
      _
    $region51: #{tpu_custom_call.1} parent=1 // pred_check_branch
      %236 = sbr.rel (0) target = $region53
    $region52: #{tpu_custom_call.1} parent=1 // pred_region
      %s238 = ssub.s32 16, 16
      %239 = vsyncadd [#allocation7], %s238
      %s241 = sshll.u32 [#allocation14], 4
      %s242 = int_to_ptr.vmem [resolvable:$true] %s241
      %244 = dma.vmem_to_hbm [thread:$0]  %s242, 16, %s5, [#allocation7]
    $region53: #{tpu_custom_call.1} parent=1 // pred_fallthru
      _
    // Predicated region
    $region54: #{tpu_custom_call.1} parent=1 // pred_check
      _
    $region55: #{tpu_custom_call.1} parent=1 // pred_check_branch
      %246 = sbr.rel (0) target = $region57
    $region56: #{tpu_custom_call.1} parent=1 // pred_region
      %247 = dma.done [#allocation7], 16
    $region57: #{tpu_custom_call.1} parent=1 // pred_fallthru
      _
    %248 = vsyncpa [#allocation6], 1
    %249 = vsyncpa [#allocation9], 1
    %250 = vsyncpa [#allocation12], 1
    %251 = vsyncpa [#allocation7], 1

</llo_original>
